<compile_context>
chip_gen: v5e
topology: v5e:2x2
jax: 0.10.0
libtpu: 0.0.40
codegen_flags: <defaults>
</compile_context>

<pallas_src>
import math
import jax
import jax.numpy as jnp
from jax.experimental import pallas as pl
from jax.experimental.pallas import tpu as pltpu

LANE = 128            # pad hidden feature dims to full vreg lanes
MAX_BATCH_TILE = 1024 # rows per grid step (docs: 512-1024 already ~85% of HBM roofline)
MIN_TILES = 4         # target grid length for 2-TC split + pipelining


def _round_up(x, m):
    return ((x + m - 1) // m) * m


def mlp_kernel(x_ref, w0_ref, b0_ref, w1_ref, b1_ref, w2_ref, b2_ref, o_ref):
    # x is bf16 (tb, D_in); weights bf16; biases f32.  Accumulate in f32 on MXU,
    # keep bias-add / ReLU in f32 on the VPU (v5e has no bf16 VALU).
    z = jnp.dot(x_ref[...], w0_ref[...], preferred_element_type=jnp.float32)
    z = jnp.maximum(z + b0_ref[...], 0.0)                        # ReLU

    z = jnp.dot(z.astype(jnp.bfloat16), w1_ref[...],
                preferred_element_type=jnp.float32)
    z = jnp.maximum(z + b1_ref[...], 0.0)                        # ReLU

    z = jnp.dot(z.astype(jnp.bfloat16), w2_ref[...],             # (tb,128)@(128,8)
                preferred_element_type=jnp.float32)
    o_ref[...] = z + b2_ref[...]                                 # identity, narrow store


def fully_connected_forward(x, prepared_params, d_out):
    """x: (B, D_in) bf16.  prepared_params: [(W bf16 (in_pad,out), b f32 (1,out))]*3.
    Last layer's out dim is the real d_out (unpadded) -> narrow f32 output."""
    (w0, b0), (w1, b1), (w2, b2) = prepared_params
    assert w2.shape[1] == d_out
    B, D_in = x.shape

    # Batch tiling: at least MIN_TILES grid steps when the batch allows, tiles
    # capped at MAX_BATCH_TILE rows, rounded to 8 sublanes (per-tile padding
    # waste < 8 rows).
    b_pad8 = _round_up(B, 8)
    n_tiles = max(pl.cdiv(b_pad8, MAX_BATCH_TILE), min(MIN_TILES, b_pad8 // 8))
    tb = _round_up(pl.cdiv(b_pad8, n_tiles), 8)
    b_pad = n_tiles * tb
    if b_pad != B:
        x = jnp.pad(x, ((0, b_pad - B), (0, 0)))

    flops = 2 * b_pad * (D_in * w0.shape[1] + w1.shape[0] * w1.shape[1]
                         + w2.shape[0] * w2.shape[1])
    bytes_accessed = (b_pad * D_in * 2                      # x (bf16)
                      + b_pad * d_out * 4                   # out (f32, narrow)
                      + (w0.size + w1.size + w2.size) * 2   # weights (bf16)
                      + (b0.size + b1.size + b2.size) * 4)  # biases (f32)

    const2d = lambda i: (0, 0)   # weights/biases: same block every step -> VMEM-resident

    out = pl.pallas_call(
        mlp_kernel,
        out_shape=jax.ShapeDtypeStruct((b_pad, d_out), jnp.float32),
        grid=(n_tiles,),
        in_specs=[
            pl.BlockSpec((tb, D_in), lambda i: (i, 0)),
            pl.BlockSpec(w0.shape, const2d), pl.BlockSpec(b0.shape, const2d),
            pl.BlockSpec(w1.shape, const2d), pl.BlockSpec(b1.shape, const2d),
            pl.BlockSpec(w2.shape, const2d), pl.BlockSpec(b2.shape, const2d),
        ],
        out_specs=pl.BlockSpec((tb, d_out), lambda i: (i, 0)),
        compiler_params=pltpu.CompilerParams(
            dimension_semantics=("parallel",),      # batch tiles shard over v7x's 2 TCs
            vmem_limit_bytes=32 * 1024 * 1024,      # safe on v7x, lifts v5e's 16 MiB default
        ),
        cost_estimate=pl.CostEstimate(
            flops=flops, transcendentals=0, bytes_accessed=bytes_accessed),
    )(x, w0, b0, w1, b1, w2, b2)

    return out[:B] if b_pad != B else out


def init_params(key, dims, activations):
    """Mirror the module's __init__: xavier_uniform weights with
    gain=calculate_gain(activation) when defined (relu -> sqrt(2), otherwise 1.0),
    and PyTorch Linear's default uniform(-1/sqrt(fan_in), 1/sqrt(fan_in)) biases.
    Weights stored pre-transposed as (in, out) so the kernel computes z @ W."""
    gains = {"relu": math.sqrt(2.0), "tanh": 5.0 / 3.0, "sigmoid": 1.0}
    params = []
    for i, act in enumerate(activations):
        fan_in, fan_out = dims[i], dims[i + 1]
        key, kw, kb = jax.random.split(key, 3)
        gain = gains.get(act, 1.0)
        bound_w = gain * math.sqrt(6.0 / (fan_in + fan_out))
        w_t = jax.random.uniform(kw, (fan_in, fan_out), jnp.float32,
                                 minval=-bound_w, maxval=bound_w)
        bound_b = 1.0 / math.sqrt(fan_in)
        b = jax.random.uniform(kb, (1, fan_out), jnp.float32,
                               minval=-bound_b, maxval=bound_b)
        params.append((w_t, b))
    return params


def prepare_params(params, lane=LANE):
    """Zero-pad HIDDEN feature dims to a multiple of 128 lanes (lane-dense
    intermediates) and cast weights to bf16; the LAST layer's output dim is
    left unpadded so the kernel writes only the real d_out columns.  Zero
    padding is exact: padded activation columns stay 0 through ReLU and
    contribute nothing downstream."""
    prepared = []
    prev_in = params[0][0].shape[0]   # input dim left unpadded (full-dim block)
    n = len(params)
    for li, (w, b) in enumerate(params):
        fan_in, fan_out = w.shape
        is_last = (li == n - 1)
        out_pad = fan_out if is_last else _round_up(fan_out, lane)
        w_p = jnp.zeros((prev_in, out_pad), jnp.float32).at[:fan_in, :fan_out].set(w)
        b_p = jnp.zeros((1, out_pad), jnp.float32).at[:, :fan_out].set(b)
        prepared.append((w_p.astype(jnp.bfloat16), b_p))
        prev_in = out_pad
    return prepared


def forward(inputs, prepared_params, d_out, dim=1, squeeze_out=False):
    """Mirrors FullyConnectedNetwork.forward (standardizer=None)."""
    x = jnp.concatenate(inputs, axis=dim)
    if x.ndim > 1 and x.shape[1] == 1:
        x = jnp.squeeze(x, axis=1)          # torch.squeeze(x, 1)
    unbatched = (x.ndim == 1)               # degenerate case: treat as one sample
    if unbatched:
        x = x[None, :]
    # Module does .float(); we feed bf16 to the MXU and accumulate in f32
    # (declared perf choice; ~1e-2 relative drift vs f32 end-to-end).
    x = x.astype(jnp.bfloat16)
    out = fully_connected_forward(x, prepared_params, d_out)
    if unbatched:
        out = out[0]
    if squeeze_out:
        out = jnp.squeeze(out)
    return out


if __name__ == "__main__":
    key = jax.random.PRNGKey(0)

    # network config
    input_dim, output_dim = 32, 8
    n_features = [64, 64]
    activations = ["relu", "relu", "identity"]
    dims = [input_dim] + n_features + [output_dim]

    k_params, k_x1, k_x2 = jax.random.split(key, 3)
    params = init_params(k_params, dims, activations)
    prepared = prepare_params(params)

    # two inputs concatenated along dim=1, batch=2
    batch = 2
    x1 = jax.random.normal(k_x1, (batch, 16), jnp.float32)
    x2 = jax.random.normal(k_x2, (batch, 16), jnp.float32)

    out = forward((x1, x2), prepared, output_dim)
    out = jax.block_until_ready(out)
    assert out.shape == (batch, output_dim)

    # Reference 1: identical bf16 rounding / padded params (should match tightly).
    xcat = jnp.concatenate((x1, x2), axis=1)
    (w0p, b0p), (w1p, b1p), (w2p, b2p) = prepared
    z = jnp.dot(xcat.astype(jnp.bfloat16), w0p, preferred_element_type=jnp.float32) + b0p
    z = jnp.maximum(z, 0.0)
    z = jnp.dot(z.astype(jnp.bfloat16), w1p, preferred_element_type=jnp.float32) + b1p
    z = jnp.maximum(z, 0.0)
    z = jnp.dot(z.astype(jnp.bfloat16), w2p, preferred_element_type=jnp.float32) + b2p
    ref_bf16 = z[:, :output_dim]
    assert jnp.allclose(out, ref_bf16, atol=1e-2, rtol=1e-2)

    # Reference 2: full-f32 math with the original (unpadded) params (loose tol for bf16 drift).
    (w0, b0), (w1, b1), (w2, b2) = params
    zf = jnp.maximum(xcat @ w0 + b0, 0.0)
    zf = jnp.maximum(zf @ w1 + b1, 0.0)
    ref_f32 = zf @ w2 + b2
    assert jnp.allclose(out, ref_f32, atol=5e-2, rtol=5e-2)

    print("KERNEL_OK")
</pallas_src>

<mosaic_0001>
module attributes {stable_mosaic.version = 11 : i64} {
  func.func @mlp_kernel(%arg0: i32, %arg1: memref<8x32xbf16, #tpu.memory_space<vmem>>, %arg2: memref<32x128xbf16, #tpu.memory_space<vmem>>, %arg3: memref<1x128xf32, #tpu.memory_space<vmem>>, %arg4: memref<128x128xbf16, #tpu.memory_space<vmem>>, %arg5: memref<1x128xf32, #tpu.memory_space<vmem>>, %arg6: memref<128x8xbf16, #tpu.memory_space<vmem>>, %arg7: memref<1x8xf32, #tpu.memory_space<vmem>>, %arg8: memref<8x8xf32, #tpu.memory_space<vmem>>) attributes {dimension_semantics = [#tpu.dimension_semantics<parallel>], iteration_bounds = array<i64: 1>, scalar_prefetch = 0 : i64, scratch_operands = 0 : i64, tpu.core_type = #tpu.core_type<tc>, window_params = [{transform_indices = @transform_0, window_bounds = array<i64: 8, 32>}, {pipeline_mode = #tpu.pipeline_mode<synchronous>, transform_indices = @transform_1, window_bounds = array<i64: 32, 128>}, {pipeline_mode = #tpu.pipeline_mode<synchronous>, transform_indices = @transform_2, window_bounds = array<i64: 1, 128>}, {pipeline_mode = #tpu.pipeline_mode<synchronous>, transform_indices = @transform_3, window_bounds = array<i64: 128, 128>}, {pipeline_mode = #tpu.pipeline_mode<synchronous>, transform_indices = @transform_4, window_bounds = array<i64: 1, 128>}, {pipeline_mode = #tpu.pipeline_mode<synchronous>, transform_indices = @transform_5, window_bounds = array<i64: 128, 8>}, {pipeline_mode = #tpu.pipeline_mode<synchronous>, transform_indices = @transform_6, window_bounds = array<i64: 1, 8>}, {transform_indices = @transform_7, window_bounds = array<i64: 8, 8>}]} {
    %c0 = arith.constant 0 : index
    %c0_0 = arith.constant 0 : index
    %0 = vector.load %arg1[%c0, %c0_0] : memref<8x32xbf16, #tpu.memory_space<vmem>>, vector<8x32xbf16>
    %c0_1 = arith.constant 0 : index
    %c0_2 = arith.constant 0 : index
    %1 = vector.load %arg2[%c0_1, %c0_2] : memref<32x128xbf16, #tpu.memory_space<vmem>>, vector<32x128xbf16>
    %cst = arith.constant dense<0.000000e+00> : vector<8x128xf32>
    %2 = tpu.matmul %0, %1, %cst {dimension_numbers = #tpu.dot_dimension_numbers<[1], [0], [0], [1], [0, 0, 1, 1], [], []>} : vector<8x32xbf16>, vector<32x128xbf16>, vector<8x128xf32> -> vector<8x128xf32>
    %c0_3 = arith.constant 0 : index
    %c0_4 = arith.constant 0 : index
    %3 = vector.load %arg3[%c0_3, %c0_4] : memref<1x128xf32, #tpu.memory_space<vmem>>, vector<1x128xf32>
    %4 = vector.broadcast %3 : vector<1x128xf32> to vector<8x128xf32>
    %5 = arith.addf %2, %4 : vector<8x128xf32>
    %cst_5 = arith.constant 0.000000e+00 : f32
    %6 = vector.broadcast %cst_5 : f32 to vector<8x128xf32>
    %7 = arith.maximumf %5, %6 : vector<8x128xf32>
    %8 = arith.truncf %7 : vector<8x128xf32> to vector<8x128xbf16>
    %c0_6 = arith.constant 0 : index
    %c0_7 = arith.constant 0 : index
    %9 = vector.load %arg4[%c0_6, %c0_7] : memref<128x128xbf16, #tpu.memory_space<vmem>>, vector<128x128xbf16>
    %cst_8 = arith.constant dense<0.000000e+00> : vector<8x128xf32>
    %10 = tpu.matmul %8, %9, %cst_8 {dimension_numbers = #tpu.dot_dimension_numbers<[1], [0], [0], [1], [0, 0, 1, 1], [], []>} : vector<8x128xbf16>, vector<128x128xbf16>, vector<8x128xf32> -> vector<8x128xf32>
    %c0_9 = arith.constant 0 : index
    %c0_10 = arith.constant 0 : index
    %11 = vector.load %arg5[%c0_9, %c0_10] : memref<1x128xf32, #tpu.memory_space<vmem>>, vector<1x128xf32>
    %12 = vector.broadcast %11 : vector<1x128xf32> to vector<8x128xf32>
    %13 = arith.addf %10, %12 : vector<8x128xf32>
    %cst_11 = arith.constant 0.000000e+00 : f32
    %14 = vector.broadcast %cst_11 : f32 to vector<8x128xf32>
    %15 = arith.maximumf %13, %14 : vector<8x128xf32>
    %16 = arith.truncf %15 : vector<8x128xf32> to vector<8x128xbf16>
    %c0_12 = arith.constant 0 : index
    %c0_13 = arith.constant 0 : index
    %17 = vector.load %arg6[%c0_12, %c0_13] : memref<128x8xbf16, #tpu.memory_space<vmem>>, vector<128x8xbf16>
    %cst_14 = arith.constant dense<0.000000e+00> : vector<8x8xf32>
    %18 = tpu.matmul %16, %17, %cst_14 {dimension_numbers = #tpu.dot_dimension_numbers<[1], [0], [0], [1], [0, 0, 1, 1], [], []>} : vector<8x128xbf16>, vector<128x8xbf16>, vector<8x8xf32> -> vector<8x8xf32>
    %c0_15 = arith.constant 0 : index
    %c0_16 = arith.constant 0 : index
    %19 = vector.load %arg7[%c0_15, %c0_16] : memref<1x8xf32, #tpu.memory_space<vmem>>, vector<1x8xf32>
    %20 = vector.broadcast %19 : vector<1x8xf32> to vector<8x8xf32>
    %21 = arith.addf %18, %20 : vector<8x8xf32>
    %c0_17 = arith.constant 0 : index
    %c0_18 = arith.constant 0 : index
    %22 = vector.load %arg8[%c0_17, %c0_18] : memref<8x8xf32, #tpu.memory_space<vmem>>, vector<8x8xf32>
    tpu.vector_store %arg8[%c0_17, %c0_18], %21 {strides = array<i32>} : memref<8x8xf32, #tpu.memory_space<vmem>>, vector<8x8xf32>,
    return
  }
  func.func @transform_0(%arg0: i32) -> (i32, i32) {
    %c0_i32 = arith.constant 0 : i32
    %c0_i32_0 = arith.constant 0 : i32
    return %arg0, %c0_i32 : i32, i32
  }
  func.func @transform_1(%arg0: i32) -> (i32, i32) {
    %c0_i32 = arith.constant 0 : i32
    %c0_i32_0 = arith.constant 0 : i32
    %c0_i32_1 = arith.constant 0 : i32
    return %c0_i32, %c0_i32_0 : i32, i32
  }
  func.func @transform_2(%arg0: i32) -> (i32, i32) {
    %c0_i32 = arith.constant 0 : i32
    %c0_i32_0 = arith.constant 0 : i32
    %c0_i32_1 = arith.constant 0 : i32
    return %c0_i32, %c0_i32_0 : i32, i32
  }
  func.func @transform_3(%arg0: i32) -> (i32, i32) {
    %c0_i32 = arith.constant 0 : i32
    %c0_i32_0 = arith.constant 0 : i32
    %c0_i32_1 = arith.constant 0 : i32
    return %c0_i32, %c0_i32_0 : i32, i32
  }
  func.func @transform_4(%arg0: i32) -> (i32, i32) {
    %c0_i32 = arith.constant 0 : i32
    %c0_i32_0 = arith.constant 0 : i32
    %c0_i32_1 = arith.constant 0 : i32
    return %c0_i32, %c0_i32_0 : i32, i32
  }
  func.func @transform_5(%arg0: i32) -> (i32, i32) {
    %c0_i32 = arith.constant 0 : i32
    %c0_i32_0 = arith.constant 0 : i32
    %c0_i32_1 = arith.constant 0 : i32
    return %c0_i32, %c0_i32_0 : i32, i32
  }
  func.func @transform_6(%arg0: i32) -> (i32, i32) {
    %c0_i32 = arith.constant 0 : i32
    %c0_i32_0 = arith.constant 0 : i32
    %c0_i32_1 = arith.constant 0 : i32
    return %c0_i32, %c0_i32_0 : i32, i32
  }
  func.func @transform_7(%arg0: i32) -> (i32, i32) {
    %c0_i32 = arith.constant 0 : i32
    %c0_i32_0 = arith.constant 0 : i32
    return %arg0, %c0_i32 : i32, i32
  }
}

</mosaic_0001>

<llo_original>
// kernel: tpu_custom_call.1
$region0: #{tpu_custom_call.1}
  #allocation0 [shape = 'u32[]', space=smem, size = 0x4, offset = 0x4, fixed_abs, tag = 'smem constant byte address 0x4 - core index']
  #allocation1 [shape = 'u32[72,128]{1,0:T(1,128)}', space=vmem, size = 0x9000, scoped, tag = 'internal scratch']
  %s0 = inlined_call_operand.vmem [shape: bf16[8,32], index: 0, kind: input, shape index: {}]
  %s1 = inlined_call_operand.hbm [shape: bf16[32,128], index: 1, kind: input, shape index: {}]
  %s2 = inlined_call_operand.hbm [shape: f32[1,128], index: 2, kind: input, shape index: {}]
  %s3 = inlined_call_operand.vmem [shape: bf16[128,128], index: 3, kind: input, shape index: {}]
  %s4 = inlined_call_operand.hbm [shape: f32[1,128], index: 4, kind: input, shape index: {}]
  %s5 = inlined_call_operand.vmem [shape: bf16[128,8], index: 5, kind: input, shape index: {}]
  %s6 = inlined_call_operand.vmem [shape: f32[1,8], index: 6, kind: input, shape index: {}]
  %s7 = inlined_call_operand.hbm [shape: f32[8,8], index: 7, kind: output, shape index: {}]
  %s8 = sld [smem:[#allocation0]]
  $region50: #{tpu_custom_call.1} parent=0
    _
  %s10 = ssub.s32 1, %s8
  %s11 = scalar_select 0, %s10, %s8
  $region1: #{tpu_custom_call.1} parent=0
    #allocation2 [shape = 'u8[8192]{0}', space=vmem, size = 0x2000, scoped, tag = 'input window, operand 1, single buffered']
    #allocation3 [shape = 's32[1]{0}', space=sflag, size = 0x4, scoped, tag = 'scoped memory for tpu_custom_call.1']
    #allocation4 [shape = 's32[1]{0}', space=sflag, size = 0x4, scoped, tag = 'scoped memory for tpu_custom_call.1']
    #allocation5 [shape = 'u8[512]{0}', space=vmem, size = 0x400, scoped, tag = 'input window, operand 2, single buffered']
    #allocation6 [shape = 's32[1]{0}', space=sflag, size = 0x4, scoped, tag = 'scoped memory for tpu_custom_call.1']
    #allocation7 [shape = 'u8[512]{0}', space=vmem, size = 0x400, scoped, tag = 'input window, operand 4, single buffered']
    #allocation8 [shape = 'u8[4096]{0}', space=vmem, size = 0x1000, scoped, tag = 'output window, operand 0, single buffered']
    %12 = vsyncpa [#allocation3], 0
    %13 = vsyncpa [#allocation6], 0
    %14 = vsyncpa [#allocation4], 0
    // Predicated region
    $region2: #{tpu_custom_call.1} parent=1 // pred_check
      _
    $region3: #{tpu_custom_call.1} parent=1 // pred_check_branch
      %16 = sbr.rel (0) target = $region5
    $region4: #{tpu_custom_call.1} parent=1 // pred_region
      _
    $region5: #{tpu_custom_call.1} parent=1 // pred_fallthru
      _
    // Predicated region
    $region6: #{tpu_custom_call.1} parent=1 // pred_check
      _
    $region7: #{tpu_custom_call.1} parent=1 // pred_check_branch
      %18 = sbr.rel (0) target = $region9
    $region8: #{tpu_custom_call.1} parent=1 // pred_region
      %20 = vsyncadd [#allocation3], 0
      %s21 = sshll.u32 %s1, 4
      %s22 = int_to_ptr.hbm [resolvable:$true] %s21
      %s23 = sshll.u32 [#allocation2], 4
      %s24 = int_to_ptr.vmem [resolvable:$true] %s23
      %29 = dma.hbm_to_vmem [thread:$0]  %s22, 256, %s24, [#allocation3], 64, 64, 4
    $region9: #{tpu_custom_call.1} parent=1 // pred_fallthru
      _
    // Predicated region
    $region10: #{tpu_custom_call.1} parent=1 // pred_check
      _
    $region11: #{tpu_custom_call.1} parent=1 // pred_check_branch
      %31 = sbr.rel (0) target = $region13
    $region12: #{tpu_custom_call.1} parent=1 // pred_region
      %33 = vsyncadd [#allocation6], 0
      %s35 = sshll.u32 %s2, 4
      %s36 = int_to_ptr.hbm [resolvable:$true] %s35
      %s37 = sshll.u32 [#allocation5], 4
      %s38 = int_to_ptr.vmem [resolvable:$true] %s37
      %40 = dma.hbm_to_vmem [thread:$0]  %s36, 16, %s38, [#allocation6]
    $region13: #{tpu_custom_call.1} parent=1 // pred_fallthru
      _
    // Predicated region
    $region14: #{tpu_custom_call.1} parent=1 // pred_check
      _
    $region15: #{tpu_custom_call.1} parent=1 // pred_check_branch
      %42 = sbr.rel (0) target = $region17
    $region16: #{tpu_custom_call.1} parent=1 // pred_region
      _
    $region17: #{tpu_custom_call.1} parent=1 // pred_fallthru
      _
    // Predicated region
    $region18: #{tpu_custom_call.1} parent=1 // pred_check
      _
    $region19: #{tpu_custom_call.1} parent=1 // pred_check_branch
      %44 = sbr.rel (0) target = $region21
    $region20: #{tpu_custom_call.1} parent=1 // pred_region
      %46 = vsyncadd [#allocation6], 0
      %s48 = sshll.u32 %s4, 4
      %s49 = int_to_ptr.hbm [resolvable:$true] %s48
      %s50 = sshll.u32 [#allocation7], 4
      %s51 = int_to_ptr.vmem [resolvable:$true] %s50
      %53 = dma.hbm_to_vmem [thread:$0]  %s49, 16, %s51, [#allocation6]
    $region21: #{tpu_custom_call.1} parent=1 // pred_fallthru
      _
    // Predicated region
    $region22: #{tpu_custom_call.1} parent=1 // pred_check
      _
    $region23: #{tpu_custom_call.1} parent=1 // pred_check_branch
      %55 = sbr.rel (0) target = $region25
    $region24: #{tpu_custom_call.1} parent=1 // pred_region
      _
    $region25: #{tpu_custom_call.1} parent=1 // pred_fallthru
      _
    // Predicated region
    $region26: #{tpu_custom_call.1} parent=1 // pred_check
      _
    $region27: #{tpu_custom_call.1} parent=1 // pred_check_branch
      %57 = sbr.rel (0) target = $region29
    $region28: #{tpu_custom_call.1} parent=1 // pred_region
      _
    $region29: #{tpu_custom_call.1} parent=1 // pred_fallthru
      _
    // Predicated region
    $region30: #{tpu_custom_call.1} parent=1 // pred_check
      _
    $region31: #{tpu_custom_call.1} parent=1 // pred_check_branch
      %59 = sbr.rel (0) target = $region33
    $region32: #{tpu_custom_call.1} parent=1 // pred_region
      %61 = dma.done [#allocation3], 256
    $region33: #{tpu_custom_call.1} parent=1 // pred_fallthru
      _
    // Predicated region
    $region34: #{tpu_custom_call.1} parent=1 // pred_check
      _
    $region35: #{tpu_custom_call.1} parent=1 // pred_check_branch
      %63 = sbr.rel (0) target = $region37
    $region36: #{tpu_custom_call.1} parent=1 // pred_region
      %65 = dma.done [#allocation6], 16
    $region37: #{tpu_custom_call.1} parent=1 // pred_fallthru
      _
    // Predicated region
    $region38: #{tpu_custom_call.1} parent=1 // pred_check
      _
    $region39: #{tpu_custom_call.1} parent=1 // pred_check_branch
      %67 = sbr.rel (0) target = $region41
    $region40: #{tpu_custom_call.1} parent=1 // pred_region
      %69 = dma.done [#allocation6], 16
    $region41: #{tpu_custom_call.1} parent=1 // pred_fallthru
      _
    %v71 = vld [vmem:[%s0] sm:$0xf]
    %v72 = vld [vmem:[#allocation2] sm:$0xf]
    %v73 = vld [vmem:[#allocation2 + $0x4] sm:$0xf]
    %v74 = vld [vmem:[#allocation2 + $0x8] sm:$0xf]
    %v75 = vld [vmem:[#allocation2 + $0xc] sm:$0xf]
    %v76 = vld [vmem:[#allocation5] sm:$0x1]
    %v78 = vperm.slane %v76, 0
    %v84 = vunpack.c.l.b16 %v72
    %v85 = vunpack.c.l.b16 %v73
    %v86 = vunpack.c.l.b16 %v74
    %v87 = vunpack.c.l.b16 %v75
    %v88 = vpack.c.b16 %v85, %v84
    %v89 = vpack.c.b16 %v87, %v86
    %vm92 = vcmask 261120
    %v94 = vsel %vm92, %v71, 0
    %96 = vmatpush.bf16.msra.mxu0 0
    %97 = vmatpush.bf16.msra.mxu0 0
    %98 = vmatpush.bf16.msra.mxu0 0
    %99 = vmatpush.bf16.msra.mxu0 0
    %100 = vmatpush.bf16.msra.mxu0 0
    %101 = vmatpush.bf16.msra.mxu0 0
    %102 = vmatpush.bf16.msra.mxu0 %v89
    %103 = vmatpush.bf16.msra.mxu0 %v88
    %104 = vmatmul.bf16.gmra.mxu0 %v94
    %v105 = vpop.f32.mrf.mxu0
    %v106 = vadd.f32 %v78, %v105
    %v107 = vpop.f32.mrf.mxu0
    %108 = vdwg.mxu0
    %v109 = vmax.f32 %v106, 0.0
    %v110 = vpack.c.bf16 %v109, %v109
    %v111 = vld [vmem:[%s3] sm:$0xf]
    %v112 = vld [vmem:[%s3 + $0x4] sm:$0xf]
    %v113 = vld [vmem:[%s3 + $0x8] sm:$0xf]
    %v114 = vld [vmem:[%s3 + $0xc] sm:$0xf]
    %v115 = vld [vmem:[%s3 + $0x10] sm:$0xf]
    %v116 = vld [vmem:[%s3 + $0x14] sm:$0xf]
    %v117 = vld [vmem:[%s3 + $0x18] sm:$0xf]
    %v118 = vld [vmem:[%s3 + $0x1c] sm:$0xf]
    %v119 = vld [vmem:[%s3 + $0x20] sm:$0xf]
    %v120 = vld [vmem:[%s3 + $0x24] sm:$0xf]
    %v121 = vld [vmem:[%s3 + $0x28] sm:$0xf]
    %v122 = vld [vmem:[%s3 + $0x2c] sm:$0xf]
    %v123 = vld [vmem:[%s3 + $0x30] sm:$0xf]
    %v124 = vld [vmem:[%s3 + $0x34] sm:$0xf]
    %v125 = vld [vmem:[%s3 + $0x38] sm:$0xf]
    %v126 = vld [vmem:[%s3 + $0x3c] sm:$0xf]
    %v127 = vld [vmem:[#allocation7] sm:$0x1]
    %v129 = vperm.slane %v127, 0
    %v147 = vunpack.c.l.b16 %v111
    %v148 = vunpack.c.l.b16 %v112
    %v149 = vunpack.c.l.b16 %v113
    %v150 = vunpack.c.l.b16 %v114
    %v151 = vunpack.c.l.b16 %v115
    %v152 = vunpack.c.l.b16 %v116
    %v153 = vunpack.c.l.b16 %v117
    %v154 = vunpack.c.l.b16 %v118
    %v155 = vunpack.c.l.b16 %v119
    %v156 = vunpack.c.l.b16 %v120
    %v157 = vunpack.c.l.b16 %v121
    %v158 = vunpack.c.l.b16 %v122
    %v159 = vunpack.c.l.b16 %v123
    %v160 = vunpack.c.l.b16 %v124
    %v161 = vunpack.c.l.b16 %v125
    %v162 = vunpack.c.l.b16 %v126
    %v163 = vpack.c.b16 %v148, %v147
    %v164 = vpack.c.b16 %v150, %v149
    %v165 = vpack.c.b16 %v152, %v151
    %v166 = vpack.c.b16 %v154, %v153
    %v167 = vpack.c.b16 %v156, %v155
    %v168 = vpack.c.b16 %v158, %v157
    %v169 = vpack.c.b16 %v160, %v159
    %v170 = vpack.c.b16 %v162, %v161
    %179 = vmatpush.bf16.msra.mxu0 %v170
    %180 = vmatpush.bf16.msra.mxu0 %v169
    %181 = vmatpush.bf16.msra.mxu0 %v168
    %182 = vmatpush.bf16.msra.mxu0 %v167
    %183 = vmatpush.bf16.msra.mxu0 %v166
    %184 = vmatpush.bf16.msra.mxu0 %v165
    %185 = vmatpush.bf16.msra.mxu0 %v164
    %186 = vmatpush.bf16.msra.mxu0 %v163
    %187 = vmatmul.bf16.gmra.mxu0 %v110
    %v188 = vpop.f32.mrf.mxu0
    %v189 = vadd.f32 %v129, %v188
    %v190 = vpop.f32.mrf.mxu0
    %191 = vdwg.mxu0
    %v192 = vmax.f32 %v189, 0.0
    %v193 = vpack.c.bf16 %v192, %v192
    %v194 = vld [vmem:[%s5] sm:$0xf]
    %v195 = vld [vmem:[%s5 + $0x4] sm:$0xf]
    %v196 = vld [vmem:[%s5 + $0x8] sm:$0xf]
    %v197 = vld [vmem:[%s5 + $0xc] sm:$0xf]
    %v198 = vld [vmem:[%s5 + $0x10] sm:$0xf]
    %v199 = vld [vmem:[%s5 + $0x14] sm:$0xf]
    %v200 = vld [vmem:[%s5 + $0x18] sm:$0xf]
    %v201 = vld [vmem:[%s5 + $0x1c] sm:$0xf]
    %v202 = vld [vmem:[%s5 + $0x20] sm:$0xf]
    %v203 = vld [vmem:[%s5 + $0x24] sm:$0xf]
    %v204 = vld [vmem:[%s5 + $0x28] sm:$0xf]
    %v205 = vld [vmem:[%s5 + $0x2c] sm:$0xf]
    %v206 = vld [vmem:[%s5 + $0x30] sm:$0xf]
    %v207 = vld [vmem:[%s5 + $0x34] sm:$0xf]
    %v208 = vld [vmem:[%s5 + $0x38] sm:$0xf]
    %v209 = vld [vmem:[%s5 + $0x3c] sm:$0xf]
    %v210 = vld [vmem:[%s6] sm:$0x1]
    %v212 = vperm.slane %v210, 0
    %v230 = vunpack.c.l.b16 %v194
    %v231 = vunpack.c.l.b16 %v195
    %v232 = vunpack.c.l.b16 %v196
    %v233 = vunpack.c.l.b16 %v197
    %v234 = vunpack.c.l.b16 %v198
    %v235 = vunpack.c.l.b16 %v199
    %v236 = vunpack.c.l.b16 %v200
    %v237 = vunpack.c.l.b16 %v201
    %v238 = vunpack.c.l.b16 %v202
    %v239 = vunpack.c.l.b16 %v203
    %v240 = vunpack.c.l.b16 %v204
    %v241 = vunpack.c.l.b16 %v205
    %v242 = vunpack.c.l.b16 %v206
    %v243 = vunpack.c.l.b16 %v207
    %v244 = vunpack.c.l.b16 %v208
    %v245 = vunpack.c.l.b16 %v209
    %v246 = vpack.c.b16 %v231, %v230
    %v247 = vpack.c.b16 %v233, %v232
    %v248 = vpack.c.b16 %v235, %v234
    %v249 = vpack.c.b16 %v237, %v236
    %v250 = vpack.c.b16 %v239, %v238
    %v251 = vpack.c.b16 %v241, %v240
    %v252 = vpack.c.b16 %v243, %v242
    %v253 = vpack.c.b16 %v245, %v244
    %262 = vmatpush.bf16.msra.mxu0 %v253
    %263 = vmatpush.bf16.msra.mxu0 %v252
    %264 = vmatpush.bf16.msra.mxu0 %v251
    %265 = vmatpush.bf16.msra.mxu0 %v250
    %266 = vmatpush.bf16.msra.mxu0 %v249
    %267 = vmatpush.bf16.msra.mxu0 %v248
    %268 = vmatpush.bf16.msra.mxu0 %v247
    %269 = vmatpush.bf16.msra.mxu0 %v246
    %270 = vmatmul.bf16.gmra.mxu0 %v193
    %v271 = vpop.f32.mrf.mxu0
    %v272 = vadd.f32 %v212, %v271
    %v273 = vpop.f32.mrf.mxu0
    %274 = vdwg.mxu0
    %vm275 = vcmask 64512
    %276 = vst.msk [vmem:[#allocation8] sm:$0xff] %vm275, %v272
    // Predicated region
    $region42: #{tpu_custom_call.1} parent=1 // pred_check
      _
    $region43: #{tpu_custom_call.1} parent=1 // pred_check_branch
      %278 = sbr.rel (0) target = $region45
    $region44: #{tpu_custom_call.1} parent=1 // pred_region
      %280 = vsyncadd [#allocation4], 0
      %s282 = sshll.u32 [#allocation8], 4
      %s283 = int_to_ptr.vmem [resolvable:$true] %s282
      %s284 = sshll.u32 %s7, 4
      %s285 = int_to_ptr.hbm [resolvable:$true] %s284
      %287 = dma.vmem_to_hbm [thread:$0]  %s283, 128, %s285, [#allocation4]
    $region45: #{tpu_custom_call.1} parent=1 // pred_fallthru
      _
    // Predicated region
    $region46: #{tpu_custom_call.1} parent=1 // pred_check
      _
    $region47: #{tpu_custom_call.1} parent=1 // pred_check_branch
      %289 = sbr.rel (0) target = $region49
    $region48: #{tpu_custom_call.1} parent=1 // pred_region
      %291 = dma.done [#allocation4], 128
    $region49: #{tpu_custom_call.1} parent=1 // pred_fallthru
      _
    %292 = vsyncpa [#allocation3], 1
    %293 = vsyncpa [#allocation6], 1
    %294 = vsyncpa [#allocation4], 1

</llo_original>
